<compile_context>
chip_gen: v6e
topology: v6e:2x2x1
jax: 0.10.0
libtpu: 0.0.40
codegen_flags: <defaults>
</compile_context>

<pallas_src>
import jax
import jax.numpy as jnp
from jax.experimental import pallas as pl
from jax.experimental.pallas import tpu as pltpu


def _channel_attention_kernel(x_ref, w1a_ref, w1b_ref, b1_ref, w2_ref, b2_ref,
                              alpha_ref, out_ref):
    """NB batch elements per grid step.

    x_ref:     (NB, C, HW) input slab (native dtype)
    w1a_ref:   (C, Cr) = W1[:, :C].T  (f32, acts on the avg-pooled vector)
    w1b_ref:   (C, Cr) = W1[:, C:].T  (f32, acts on the max-pooled vector)
    b1_ref:    (1, Cr) f32
    w2_ref:    (C, Cr) f32
    b2_ref:    (C, 1)  f32
    alpha_ref: (1,) PReLU parameter in SMEM
    out_ref:   (NB, C, HW)
    """
    x = x_ref[...]                                           # (NB, C, HW), native dtype
    inv_hw = jnp.float32(1.0 / x.shape[-1])

    # Adaptive avg / max pool to 1x1 per channel; both reductions consume the
    # same loaded slab, accumulation in f32.
    avg = jnp.sum(x, axis=-1, keepdims=True, dtype=jnp.float32) * inv_hw   # (NB, C, 1)
    mx = jnp.max(x, axis=-1, keepdims=True).astype(jnp.float32)            # (NB, C, 1)

    w1a = w1a_ref[...]                                       # (C, Cr) f32
    w1b = w1b_ref[...]                                       # (C, Cr) f32
    b1 = b1_ref[...]                                         # (1, Cr) f32
    w2 = w2_ref[...]                                         # (C, Cr) f32
    b2 = b2_ref[...]                                         # (C, 1)  f32
    alpha = alpha_ref[0]                                     # scalar (SMEM)

    # First 1x1 conv on cat([avg, max]):
    #   y1[n, j] = sum_c W1[j,c]*avg[n,c] + W1[j,C+c]*mx[n,c] + b1[j]
    y1 = jnp.sum(w1a * avg + w1b * mx, axis=1, keepdims=True) + b1         # (NB, 1, Cr)
    # PReLU (single shared parameter, nn.PReLU() default)
    y1 = jnp.where(y1 >= 0, y1, alpha * y1)
    # Second 1x1 conv:  y2[n, c] = sum_j W2[c,j]*y1[n,j] + b2[c]
    y2 = jnp.sum(w2 * y1, axis=-1, keepdims=True) + b2                      # (NB, C, 1)
    scale = jax.nn.sigmoid(y2)                                              # (NB, C, 1)

    # Scale in the input dtype (no f32 slab materialized).
    out_ref[...] = x * scale.astype(x.dtype)


def channel_attention(x, w1, b1, prelu_a, w2, b2, *, target_block_bytes=1 << 20):
    """ChannelAttention forward.

    x:  (N, C, H, W)
    w1: (C//r, 2C)   -- first 1x1 conv weight (squeezed from (C//r, 2C, 1, 1))
    b1: (C//r,)
    prelu_a: scalar PReLU parameter
    w2: (C, C//r)    -- second 1x1 conv weight
    b2: (C,)
    returns (N, C, H, W)
    """
    N, C, H, W = x.shape
    Cr = w1.shape[0]
    assert w1.shape == (Cr, 2 * C), w1.shape
    assert w2.shape == (C, Cr), w2.shape
    HW = H * W

    # Contiguous NCHW -> (N, C, H*W): a view, no HBM copy. Native dtype kept.
    # (HW = 256 here -> lane-dense, unmasked stores; non-128-multiples still
    # run correctly since the block spans the full HW extent.)
    x3 = x.reshape(N, C, HW)

    # Tiny weight reshapes/transposes + one-time f32 cast (a few KiB at most;
    # weights are resident across all grid steps).
    w1a_t = jnp.transpose(w1[:, :C]).astype(jnp.float32)     # (C, Cr)
    w1b_t = jnp.transpose(w1[:, C:]).astype(jnp.float32)     # (C, Cr)
    b1_row = b1.reshape(1, Cr).astype(jnp.float32)
    w2_f = w2.astype(jnp.float32)
    b2_col = b2.reshape(C, 1).astype(jnp.float32)
    alpha = jnp.asarray(prelu_a, jnp.float32).reshape(1)

    # --- Pick NB (batch elements per grid step) ---
    # Target ~1 MiB blocks (measured: tiny blocks reach only ~30% of HBM
    # roofline; 512+-wide blocks ~85%), keep >= 2 grid steps when N > 1 so a
    # v7x megacore shards the batch across both TCs, and keep NB | N to avoid
    # partial blocks.
    per_elem = C * HW * x.dtype.itemsize
    nb_cap = max(1, target_block_bytes // max(per_elem, 1))
    if N > 1:
        nb_cap = min(nb_cap, max(1, N // 2))
    nb = 1
    for cand in range(min(N, nb_cap), 0, -1):
        if N % cand == 0:
            nb = cand
            break
    grid = (N // nb,)

    # Explicit VMEM budget: double-buffered input + output blocks, weights,
    # slack.  v5e default scoped limit is 16 MiB; keep well under v7x's 64 MiB
    # physical VMEM.
    block_bytes = nb * per_elem
    vmem_limit = int(min(112 * 2**20, max(32 * 2**20, 6 * block_bytes + (4 << 20))))

    full2d = lambda i: (0, 0)

    out = pl.pallas_call(
        _channel_attention_kernel,
        out_shape=jax.ShapeDtypeStruct((N, C, HW), x.dtype),
        grid=grid,
        in_specs=[
            pl.BlockSpec((nb, C, HW), lambda i: (i, 0, 0)),
            pl.BlockSpec((C, Cr), full2d),
            pl.BlockSpec((C, Cr), full2d),
            pl.BlockSpec((1, Cr), full2d),
            pl.BlockSpec((C, Cr), full2d),
            pl.BlockSpec((C, 1), full2d),
            pl.BlockSpec(memory_space=pltpu.MemorySpace.SMEM),
        ],
        out_specs=pl.BlockSpec((nb, C, HW), lambda i: (i, 0, 0)),
        compiler_params=pltpu.CompilerParams(
            dimension_semantics=("parallel",),
            vmem_limit_bytes=vmem_limit),
    )(x3, w1a_t, w1b_t, b1_row, w2_f, b2_col, alpha)

    return out.reshape(N, C, H, W)


def _channel_attention_ref(x, w1, b1, a, w2, b2):
    """Pure-JAX reference of the PyTorch module."""
    avg = jnp.mean(x, axis=(2, 3), keepdims=True)            # (N, C, 1, 1)
    mx = jnp.max(x, axis=(2, 3), keepdims=True)              # (N, C, 1, 1)
    y = jnp.concatenate([avg, mx], axis=1)                   # (N, 2C, 1, 1)
    y = jnp.einsum("oc,nchw->nohw", w1, y) + b1.reshape(1, -1, 1, 1)
    y = jnp.where(y >= 0, y, a * y)                          # PReLU
    y = jnp.einsum("oc,nchw->nohw", w2, y) + b2.reshape(1, -1, 1, 1)
    y = jax.nn.sigmoid(y)
    return x * y


if __name__ == "__main__":
    key = jax.random.PRNGKey(0)
    ks = jax.random.split(key, 5)

    N, C, H, W = 2, 32, 16, 16
    reduction = 8
    Cr = C // reduction

    x = jax.random.normal(ks[0], (N, C, H, W), dtype=jnp.float32)
    w1 = 0.1 * jax.random.normal(ks[1], (Cr, 2 * C), dtype=jnp.float32)
    b1 = 0.1 * jax.random.normal(ks[2], (Cr,), dtype=jnp.float32)
    w2 = 0.1 * jax.random.normal(ks[3], (C, Cr), dtype=jnp.float32)
    b2 = 0.1 * jax.random.normal(ks[4], (C,), dtype=jnp.float32)
    prelu_a = jnp.float32(0.25)   # nn.PReLU() default init

    out = channel_attention(x, w1, b1, prelu_a, w2, b2)
    out = jax.block_until_ready(out)

    ref = _channel_attention_ref(x, w1, b1, prelu_a, w2, b2)
    assert out.shape == x.shape, (out.shape, x.shape)
    err = float(jnp.max(jnp.abs(out - ref)))
    assert jnp.allclose(out, ref, rtol=1e-5, atol=1e-5), err
    print("KERNEL_OK")
</pallas_src>

<mosaic_0001>
module attributes {stable_mosaic.version = 11 : i64} {
  func.func @_channel_attention_kernel(%arg0: i32, %arg1: memref<1x32x256xf32, #tpu.memory_space<vmem>>, %arg2: memref<32x4xf32, #tpu.memory_space<vmem>>, %arg3: memref<32x4xf32, #tpu.memory_space<vmem>>, %arg4: memref<1x4xf32, #tpu.memory_space<vmem>>, %arg5: memref<32x4xf32, #tpu.memory_space<vmem>>, %arg6: memref<32x1xf32, #tpu.memory_space<vmem>>, %arg7: memref<1xf32, #tpu.memory_space<smem>>, %arg8: memref<1x32x256xf32, #tpu.memory_space<vmem>>) attributes {dimension_semantics = [#tpu.dimension_semantics<parallel>], iteration_bounds = array<i64: 2>, scalar_prefetch = 0 : i64, scratch_operands = 0 : i64, tpu.core_type = #tpu.core_type<tc>, window_params = [{transform_indices = @transform_0, window_bounds = array<i64: 1, 32, 256>}, {pipeline_mode = #tpu.pipeline_mode<synchronous>, transform_indices = @transform_1, window_bounds = array<i64: 32, 4>}, {pipeline_mode = #tpu.pipeline_mode<synchronous>, transform_indices = @transform_2, window_bounds = array<i64: 32, 4>}, {pipeline_mode = #tpu.pipeline_mode<synchronous>, transform_indices = @transform_3, window_bounds = array<i64: 1, 4>}, {pipeline_mode = #tpu.pipeline_mode<synchronous>, transform_indices = @transform_4, window_bounds = array<i64: 32, 4>}, {pipeline_mode = #tpu.pipeline_mode<synchronous>, transform_indices = @transform_5, window_bounds = array<i64: 32, 1>}, {transform_indices = @transform_6, window_bounds = array<i64: 1>}, {transform_indices = @transform_7, window_bounds = array<i64: 1, 32, 256>}]} {
    %c0 = arith.constant 0 : index
    %c0_0 = arith.constant 0 : index
    %c0_1 = arith.constant 0 : index
    %0 = vector.load %arg1[%c0, %c0_0, %c0_1] : memref<1x32x256xf32, #tpu.memory_space<vmem>>, vector<1x32x256xf32>
    %cst = arith.constant dense<0.000000e+00> : vector<1x32xf32>
    %1 = vector.multi_reduction <add>, %0, %cst [2] : vector<1x32x256xf32> to vector<1x32xf32>
    %2 = vector.shape_cast %1 : vector<1x32xf32> to vector<1x32x1xf32>
    %cst_2 = arith.constant 3.906250e-03 : f32
    %3 = vector.broadcast %cst_2 : f32 to vector<1x32x1xf32>
    %4 = arith.mulf %2, %3 : vector<1x32x1xf32>
    %cst_3 = arith.constant dense<0xFF800000> : vector<1x32xf32>
    %5 = vector.multi_reduction <maximumf>, %0, %cst_3 [2] : vector<1x32x256xf32> to vector<1x32xf32>
    %6 = vector.shape_cast %5 : vector<1x32xf32> to vector<1x32x1xf32>
    %c0_4 = arith.constant 0 : index
    %c0_5 = arith.constant 0 : index
    %7 = vector.load %arg2[%c0_4, %c0_5] : memref<32x4xf32, #tpu.memory_space<vmem>>, vector<32x4xf32>
    %c0_6 = arith.constant 0 : index
    %c0_7 = arith.constant 0 : index
    %8 = vector.load %arg3[%c0_6, %c0_7] : memref<32x4xf32, #tpu.memory_space<vmem>>, vector<32x4xf32>
    %c0_8 = arith.constant 0 : index
    %c0_9 = arith.constant 0 : index
    %9 = vector.load %arg4[%c0_8, %c0_9] : memref<1x4xf32, #tpu.memory_space<vmem>>, vector<1x4xf32>
    %c0_10 = arith.constant 0 : index
    %c0_11 = arith.constant 0 : index
    %10 = vector.load %arg5[%c0_10, %c0_11] : memref<32x4xf32, #tpu.memory_space<vmem>>, vector<32x4xf32>
    %c0_12 = arith.constant 0 : index
    %c0_13 = arith.constant 0 : index
    %11 = vector.load %arg6[%c0_12, %c0_13] : memref<32x1xf32, #tpu.memory_space<vmem>>, vector<32x1xf32>
    %c0_14 = arith.constant 0 : index
    %12 = memref.load %arg7[%c0_14] : memref<1xf32, #tpu.memory_space<smem>>
    %13 = vector.shape_cast %7 : vector<32x4xf32> to vector<1x32x4xf32>
    %14 = vector.broadcast %4 : vector<1x32x1xf32> to vector<1x32x4xf32>
    %15 = arith.mulf %13, %14 : vector<1x32x4xf32>
    %16 = vector.shape_cast %8 : vector<32x4xf32> to vector<1x32x4xf32>
    %17 = vector.broadcast %6 : vector<1x32x1xf32> to vector<1x32x4xf32>
    %18 = arith.mulf %16, %17 : vector<1x32x4xf32>
    %19 = arith.addf %15, %18 : vector<1x32x4xf32>
    %cst_15 = arith.constant dense<0.000000e+00> : vector<1x4xf32>
    %20 = vector.multi_reduction <add>, %19, %cst_15 [1] : vector<1x32x4xf32> to vector<1x4xf32>
    %21 = vector.shape_cast %20 : vector<1x4xf32> to vector<1x1x4xf32>
    %22 = vector.shape_cast %9 : vector<1x4xf32> to vector<1x1x4xf32>
    %23 = arith.addf %21, %22 : vector<1x1x4xf32>
    %cst_16 = arith.constant 0.000000e+00 : f32
    %24 = vector.broadcast %cst_16 : f32 to vector<1x1x4xf32>
    %25 = arith.cmpf oge, %23, %24 : vector<1x1x4xf32>
    %26 = vector.broadcast %12 : f32 to vector<1x1x4xf32>
    %27 = arith.mulf %26, %23 : vector<1x1x4xf32>
    %28 = arith.select %25, %23, %27 : vector<1x1x4xi1>, vector<1x1x4xf32>
    %29 = vector.shape_cast %10 : vector<32x4xf32> to vector<1x32x4xf32>
    %30 = vector.broadcast %28 : vector<1x1x4xf32> to vector<1x32x4xf32>
    %31 = arith.mulf %29, %30 : vector<1x32x4xf32>
    %cst_17 = arith.constant dense<0.000000e+00> : vector<1x32xf32>
    %32 = vector.multi_reduction <add>, %31, %cst_17 [2] : vector<1x32x4xf32> to vector<1x32xf32>
    %33 = vector.shape_cast %32 : vector<1x32xf32> to vector<1x32x1xf32>
    %34 = vector.shape_cast %11 : vector<32x1xf32> to vector<1x32x1xf32>
    %35 = arith.addf %33, %34 : vector<1x32x1xf32>
    %36 = arith.negf %35 : vector<1x32x1xf32>
    %37 = math.exp %36 : vector<1x32x1xf32>
    %cst_18 = arith.constant 1.000000e+00 : f32
    %38 = vector.broadcast %cst_18 : f32 to vector<1x32x1xf32>
    %39 = arith.addf %38, %37 : vector<1x32x1xf32>
    %40 = arith.divf %38, %39 : vector<1x32x1xf32>
    %41 = vector.broadcast %40 : vector<1x32x1xf32> to vector<1x32x256xf32>
    %42 = arith.mulf %0, %41 : vector<1x32x256xf32>
    %c0_19 = arith.constant 0 : index
    %c0_20 = arith.constant 0 : index
    %c0_21 = arith.constant 0 : index
    %43 = vector.load %arg8[%c0_19, %c0_20, %c0_21] : memref<1x32x256xf32, #tpu.memory_space<vmem>>, vector<1x32x256xf32>
    tpu.vector_store %arg8[%c0_19, %c0_20, %c0_21], %42 {strides = array<i32>} : memref<1x32x256xf32, #tpu.memory_space<vmem>>, vector<1x32x256xf32>,
    return
  }
  func.func @transform_0(%arg0: i32) -> (i32, i32, i32) {
    %c0_i32 = arith.constant 0 : i32
    %c0_i32_0 = arith.constant 0 : i32
    %c0_i32_1 = arith.constant 0 : i32
    return %arg0, %c0_i32, %c0_i32_0 : i32, i32, i32
  }
  func.func @transform_1(%arg0: i32) -> (i32, i32) {
    %c0_i32 = arith.constant 0 : i32
    %c0_i32_0 = arith.constant 0 : i32
    %c0_i32_1 = arith.constant 0 : i32
    return %c0_i32, %c0_i32_0 : i32, i32
  }
  func.func @transform_2(%arg0: i32) -> (i32, i32) {
    %c0_i32 = arith.constant 0 : i32
    %c0_i32_0 = arith.constant 0 : i32
    %c0_i32_1 = arith.constant 0 : i32
    return %c0_i32, %c0_i32_0 : i32, i32
  }
  func.func @transform_3(%arg0: i32) -> (i32, i32) {
    %c0_i32 = arith.constant 0 : i32
    %c0_i32_0 = arith.constant 0 : i32
    %c0_i32_1 = arith.constant 0 : i32
    return %c0_i32, %c0_i32_0 : i32, i32
  }
  func.func @transform_4(%arg0: i32) -> (i32, i32) {
    %c0_i32 = arith.constant 0 : i32
    %c0_i32_0 = arith.constant 0 : i32
    %c0_i32_1 = arith.constant 0 : i32
    return %c0_i32, %c0_i32_0 : i32, i32
  }
  func.func @transform_5(%arg0: i32) -> (i32, i32) {
    %c0_i32 = arith.constant 0 : i32
    %c0_i32_0 = arith.constant 0 : i32
    %c0_i32_1 = arith.constant 0 : i32
    return %c0_i32, %c0_i32_0 : i32, i32
  }
  func.func @transform_6(%arg0: i32) -> i32 {
    %c0_i32 = arith.constant 0 : i32
    %c0_i32_0 = arith.constant 0 : i32
    return %c0_i32 : i32
  }
  func.func @transform_7(%arg0: i32) -> (i32, i32, i32) {
    %c0_i32 = arith.constant 0 : i32
    %c0_i32_0 = arith.constant 0 : i32
    %c0_i32_1 = arith.constant 0 : i32
    return %arg0, %c0_i32, %c0_i32_0 : i32, i32, i32
  }
}

</mosaic_0001>

<llo_original>
// kernel: tpu_custom_call.1
$region0: #{tpu_custom_call.1}
  #allocation0 [shape = 'u32[]', space=smem, size = 0x4, offset = 0x4, fixed_abs, tag = 'smem constant byte address 0x4 - core index']
  #allocation1 [shape = 'u32[144,128]{1,0:T(1,128)}', space=vmem, size = 0x12000, scoped, tag = 'internal scratch']
  #allocation2 [shape = 'f32[1]{0:T(128)S(6)}', space=smem, size = 0x200, scoped, tag = 'scoped memory for tpu_custom_call.1']
  %s0 = inlined_call_operand.vmem [shape: f32[2,32,256], index: 0, kind: input, shape index: {}]
  %s1 = inlined_call_operand.vmem [shape: f32[32,4], index: 1, kind: input, shape index: {}]
  %s2 = inlined_call_operand.vmem [shape: f32[32,4], index: 2, kind: input, shape index: {}]
  %s3 = inlined_call_operand.vmem [shape: f32[1,4], index: 3, kind: input, shape index: {}]
  %s4 = inlined_call_operand.vmem [shape: f32[32,4], index: 4, kind: input, shape index: {}]
  %s5 = inlined_call_operand.vmem [shape: f32[32,1], index: 5, kind: input, shape index: {}]
  %s6 = inlined_call_operand.<no memory space> [shape: f32[1], index: 6, kind: input, shape index: {}]
  %s7 = inlined_call_operand.hbm [shape: f32[2,32,256], index: 7, kind: output, shape index: {}]
  %s8 = sld [smem:[#allocation0]]
  $region61: #{tpu_custom_call.1} parent=0
    _
  %s10 = ssub.s32 1, %s8
  %s11 = scalar_select 0, %s10, %s8
  %12 = sst [smem:[#allocation2]] %s6
  $region1: #{tpu_custom_call.1} parent=0
    #allocation3 [shape = 'u8[65536]{0}', space=vmem, size = 0x10000, scoped, tag = 'output window, operand 0']
    #allocation4 [shape = 's32[2]{0}', space=sflag, size = 0x8, scoped, tag = 'scoped memory for tpu_custom_call.1']
    %13 = vsyncpa [#allocation4], 0
    %s14 = scalar_lea.sflag [#allocation4], 1
    %15 = vsyncpa %s14, 0
    loop: start=0, step=1, limit=4
    $region2: #{tpu_custom_call.1} parent=1 // loop_pre_header
      _
    $region3: #{tpu_custom_call.1} parent=1 // loop_header
      %s17 = sphi 0, %s21
      %p18 = scmp.ge.s32.totalorder %s17, 4
      %s27 = sphi 0, %s29
      %s30 = sphi 0, %s27
      %s31 = sphi 0, %s30
      %s47 = sphi 0, %s31
      %s51 = sphi 0, %s51
      %s53 = sphi 0, %s51
      %s54 = sphi 0, %s53
      %s68 = sphi 0, %s54
      %s72 = sphi 0, %s72
      %s74 = sphi 0, %s72
      %s75 = sphi 0, %s74
      %s89 = sphi 0, %s75
      %s93 = sphi 0, %s93
      %s95 = sphi 0, %s93
      %s96 = sphi 0, %s95
      %s110 = sphi 0, %s96
      %s114 = sphi 0, %s114
      %s116 = sphi 0, %s114
      %s117 = sphi 0, %s116
      %s131 = sphi 0, %s117
      %s135 = sphi 0, %s135
      %s137 = sphi 0, %s135
      %s138 = sphi 0, %s137
      %s152 = sphi 0, %s138
      %s156 = sphi 0, %s156
      %s158 = sphi 0, %s156
      %s159 = sphi 0, %s158
      %s173 = sphi 0, %s159
      %s179 = sphi 0, %s181
      %s182 = sphi 0, %s179
      %s183 = sphi 0, %s182
      %s199 = sphi 0, %s183
    $region4: #{tpu_custom_call.1} parent=1 // loop_header_branch
      %20 = sbr.rel (%p18) target = $region8
    $region5: #{tpu_custom_call.1} parent=1 // loop_body
      %s22 = ssub.s32 %s17, 1
      %s23 = ssub.s32 %s17, 2
      %s24 = sadd.s32 %s17, 1
      %s25 = ssub.s32 %s17, %s24
      %p26 = scmp.eq.s32.totalorder %s25, 0
      %s28 = sadd.s32 %s27, 1
      %s29 = scalar_select %p26, %s27, %s28
      %p32 = pneg %p26
      %p33 = scmp.eq.s32.totalorder %s17, 1
      %p34 = por %p32, %p33
      %p35 = scmp.ne.s32.totalorder %s27, %s30
      %p36 = scmp.eq.s32.totalorder %s17, 0
      %p37 = por %p35, %p36
      %p38 = scmp.ne.s32.totalorder %s27, %s30
      %p39 = scmp.eq.s32.totalorder %s22, 1
      %p40 = por %p38, %p39
      %p41 = scmp.ne.s32.totalorder %s30, %s31
      %p42 = scmp.eq.s32.totalorder %s22, 0
      %p43 = por %p41, %p42
      %p44 = scmp.ne.s32.totalorder %s30, %s31
      %p45 = scmp.eq.s32.totalorder %s23, 1
      %p46 = por %p44, %p45
      %p48 = scmp.ne.s32.totalorder %s31, %s47
      %p49 = scmp.eq.s32.totalorder %s23, 0
      %p50 = por %p48, %p49
      %s52 = sadd.s32 %s51, 1
      %p55 = scmp.eq.s32.totalorder %s17, 1
      %p56 = scmp.ne.s32.totalorder %s51, %s53
      %p57 = scmp.eq.s32.totalorder %s17, 0
      %p58 = por %p56, %p57
      %p59 = scmp.ne.s32.totalorder %s51, %s53
      %p60 = scmp.eq.s32.totalorder %s22, 1
      %p61 = por %p59, %p60
      %p62 = scmp.ne.s32.totalorder %s53, %s54
      %p63 = scmp.eq.s32.totalorder %s22, 0
      %p64 = por %p62, %p63
      %p65 = scmp.ne.s32.totalorder %s53, %s54
      %p66 = scmp.eq.s32.totalorder %s23, 1
      %p67 = por %p65, %p66
      %p69 = scmp.ne.s32.totalorder %s54, %s68
      %p70 = scmp.eq.s32.totalorder %s23, 0
      %p71 = por %p69, %p70
      %s73 = sadd.s32 %s72, 1
      %p76 = scmp.eq.s32.totalorder %s17, 1
      %p77 = scmp.ne.s32.totalorder %s72, %s74
      %p78 = scmp.eq.s32.totalorder %s17, 0
      %p79 = por %p77, %p78
      %p80 = scmp.ne.s32.totalorder %s72, %s74
      %p81 = scmp.eq.s32.totalorder %s22, 1
      %p82 = por %p80, %p81
      %p83 = scmp.ne.s32.totalorder %s74, %s75
      %p84 = scmp.eq.s32.totalorder %s22, 0
      %p85 = por %p83, %p84
      %p86 = scmp.ne.s32.totalorder %s74, %s75
      %p87 = scmp.eq.s32.totalorder %s23, 1
      %p88 = por %p86, %p87
      %p90 = scmp.ne.s32.totalorder %s75, %s89
      %p91 = scmp.eq.s32.totalorder %s23, 0
      %p92 = por %p90, %p91
      %s94 = sadd.s32 %s93, 1
      %p97 = scmp.eq.s32.totalorder %s17, 1
      %p98 = scmp.ne.s32.totalorder %s93, %s95
      %p99 = scmp.eq.s32.totalorder %s17, 0
      %p100 = por %p98, %p99
      %p101 = scmp.ne.s32.totalorder %s93, %s95
      %p102 = scmp.eq.s32.totalorder %s22, 1
      %p103 = por %p101, %p102
      %p104 = scmp.ne.s32.totalorder %s95, %s96
      %p105 = scmp.eq.s32.totalorder %s22, 0
      %p106 = por %p104, %p105
      %p107 = scmp.ne.s32.totalorder %s95, %s96
      %p108 = scmp.eq.s32.totalorder %s23, 1
      %p109 = por %p107, %p108
      %p111 = scmp.ne.s32.totalorder %s96, %s110
      %p112 = scmp.eq.s32.totalorder %s23, 0
      %p113 = por %p111, %p112
      %s115 = sadd.s32 %s114, 1
      %p118 = scmp.eq.s32.totalorder %s17, 1
      %p119 = scmp.ne.s32.totalorder %s114, %s116
      %p120 = scmp.eq.s32.totalorder %s17, 0
      %p121 = por %p119, %p120
      %p122 = scmp.ne.s32.totalorder %s114, %s116
      %p123 = scmp.eq.s32.totalorder %s22, 1
      %p124 = por %p122, %p123
      %p125 = scmp.ne.s32.totalorder %s116, %s117
      %p126 = scmp.eq.s32.totalorder %s22, 0
      %p127 = por %p125, %p126
      %p128 = scmp.ne.s32.totalorder %s116, %s117
      %p129 = scmp.eq.s32.totalorder %s23, 1
      %p130 = por %p128, %p129
      %p132 = scmp.ne.s32.totalorder %s117, %s131
      %p133 = scmp.eq.s32.totalorder %s23, 0
      %p134 = por %p132, %p133
      %s136 = sadd.s32 %s135, 1
      %p139 = scmp.eq.s32.totalorder %s17, 1
      %p140 = scmp.ne.s32.totalorder %s135, %s137
      %p141 = scmp.eq.s32.totalorder %s17, 0
      %p142 = por %p140, %p141
      %p143 = scmp.ne.s32.totalorder %s135, %s137
      %p144 = scmp.eq.s32.totalorder %s22, 1
      %p145 = por %p143, %p144
      %p146 = scmp.ne.s32.totalorder %s137, %s138
      %p147 = scmp.eq.s32.totalorder %s22, 0
      %p148 = por %p146, %p147
      %p149 = scmp.ne.s32.totalorder %s137, %s138
      %p150 = scmp.eq.s32.totalorder %s23, 1
      %p151 = por %p149, %p150
      %p153 = scmp.ne.s32.totalorder %s138, %s152
      %p154 = scmp.eq.s32.totalorder %s23, 0
      %p155 = por %p153, %p154
      %s157 = sadd.s32 %s156, 1
      %p160 = scmp.eq.s32.totalorder %s17, 1
      %p161 = scmp.ne.s32.totalorder %s156, %s158
      %p162 = scmp.eq.s32.totalorder %s17, 0
      %p163 = por %p161, %p162
      %p164 = scmp.ne.s32.totalorder %s156, %s158
      %p165 = scmp.eq.s32.totalorder %s22, 1
      %p166 = por %p164, %p165
      %p167 = scmp.ne.s32.totalorder %s158, %s159
      %p168 = scmp.eq.s32.totalorder %s22, 0
      %p169 = por %p167, %p168
      %p170 = scmp.ne.s32.totalorder %s158, %s159
      %p171 = scmp.eq.s32.totalorder %s23, 1
      %p172 = por %p170, %p171
      %p174 = scmp.ne.s32.totalorder %s159, %s173
      %p175 = scmp.eq.s32.totalorder %s23, 0
      %p176 = por %p174, %p175
      %s177 = ssub.s32 %s17, %s24
      %p178 = scmp.eq.s32.totalorder %s177, 0
      %s180 = sadd.s32 %s179, 1
      %s181 = scalar_select %p178, %s179, %s180
      %p184 = pneg %p178
      %p185 = scmp.eq.s32.totalorder %s17, 1
      %p186 = por %p184, %p185
      %p187 = scmp.ne.s32.totalorder %s179, %s182
      %p188 = scmp.eq.s32.totalorder %s17, 0
      %p189 = por %p187, %p188
      %p190 = scmp.ne.s32.totalorder %s179, %s182
      %p191 = scmp.eq.s32.totalorder %s22, 1
      %p192 = por %p190, %p191
      %p193 = scmp.ne.s32.totalorder %s182, %s183
      %p194 = scmp.eq.s32.totalorder %s22, 0
      %p195 = por %p193, %p194
      %p196 = scmp.ne.s32.totalorder %s182, %s183
      %p197 = scmp.eq.s32.totalorder %s23, 1
      %p198 = por %p196, %p197
      %p200 = scmp.ne.s32.totalorder %s183, %s199
      %p201 = scmp.eq.s32.totalorder %s23, 0
      %p202 = por %p200, %p201
      %p203 = scmp.le.s32.totalorder 1, %s17
      %p204 = scmp.lt.s32.totalorder %s17, 3
      %p205 = pnand %p203, %p204
      %p206 = pneg %p205
      // Predicated region
      $region9: #{tpu_custom_call.1} parent=5 // pred_check
        _
      $region10: #{tpu_custom_call.1} parent=5 // pred_check_branch
        %208 = sbr.rel (%p205) target = $region12
      $region11: #{tpu_custom_call.1} parent=5 // pred_region
        %s209 = ssub.s32 %s17, 1
        // Predicated region
        $region13: #{tpu_custom_call.1} parent=11 // pred_check
          %p210 = pneg %p64
        $region14: #{tpu_custom_call.1} parent=11 // pred_check_branch
          %212 = sbr.rel (%p210) target = $region16
        $region15: #{tpu_custom_call.1} parent=11 // pred_region
          _
        $region16: #{tpu_custom_call.1} parent=11 // pred_fallthru
          _
        // Predicated region
        $region17: #{tpu_custom_call.1} parent=11 // pred_check
          %p213 = pneg %p85
        $region18: #{tpu_custom_call.1} parent=11 // pred_check_branch
          %215 = sbr.rel (%p213) target = $region20
        $region19: #{tpu_custom_call.1} parent=11 // pred_region
          _
        $region20: #{tpu_custom_call.1} parent=11 // pred_fallthru
          _
        // Predicated region
        $region21: #{tpu_custom_call.1} parent=11 // pred_check
          %p216 = pneg %p106
        $region22: #{tpu_custom_call.1} parent=11 // pred_check_branch
          %218 = sbr.rel (%p216) target = $region24
        $region23: #{tpu_custom_call.1} parent=11 // pred_region
          _
        $region24: #{tpu_custom_call.1} parent=11 // pred_fallthru
          _
        // Predicated region
        $region25: #{tpu_custom_call.1} parent=11 // pred_check
          %p219 = pneg %p127
        $region26: #{tpu_custom_call.1} parent=11 // pred_check_branch
          %221 = sbr.rel (%p219) target = $region28
        $region27: #{tpu_custom_call.1} parent=11 // pred_region
          _
        $region28: #{tpu_custom_call.1} parent=11 // pred_fallthru
          _
        // Predicated region
        $region29: #{tpu_custom_call.1} parent=11 // pred_check
          %p222 = pneg %p148
        $region30: #{tpu_custom_call.1} parent=11 // pred_check_branch
          %224 = sbr.rel (%p222) target = $region32
        $region31: #{tpu_custom_call.1} parent=11 // pred_region
          _
        $region32: #{tpu_custom_call.1} parent=11 // pred_fallthru
          _
        // Predicated region
        $region33: #{tpu_custom_call.1} parent=11 // pred_check
          %p225 = pneg %p169
        $region34: #{tpu_custom_call.1} parent=11 // pred_check_branch
          %227 = sbr.rel (%p225) target = $region36
        $region35: #{tpu_custom_call.1} parent=11 // pred_region
          _
        $region36: #{tpu_custom_call.1} parent=11 // pred_fallthru
          _
      $region12: #{tpu_custom_call.1} parent=5 // pred_fallthru
        _
      %p228 = scmp.lt.s32.totalorder %s17, 2
      // Predicated region
      $region37: #{tpu_custom_call.1} parent=5 // pred_check
        %p229 = pneg %p228
      $region38: #{tpu_custom_call.1} parent=5 // pred_check_branch
        %231 = sbr.rel (%p229) target = $region40
      $region39: #{tpu_custom_call.1} parent=5 // pred_region
        // Predicated region
        $region41: #{tpu_custom_call.1} parent=39 // pred_check
          %p232 = pneg %p37
        $region42: #{tpu_custom_call.1} parent=39 // pred_check_branch
          %234 = sbr.rel (%p232) target = $region44
        $region43: #{tpu_custom_call.1} parent=39 // pred_region
          %p235 = scmp.lt.s32.totalorder %s17, 1
          %s236 = scalar_select %p235, %s17, 1
          %s237 = smul.addr %s236, 8
          %s238 = smul.addr %s237, 8
          %s239 = scalar_lea.vmem %s0, %s238
        $region44: #{tpu_custom_call.1} parent=39 // pred_fallthru
          _
      $region40: #{tpu_custom_call.1} parent=5 // pred_fallthru
        _
      %p240 = scmp.le.s32.totalorder 1, %s17
      %p241 = scmp.lt.s32.totalorder %s17, 3
      %p242 = pnand %p240, %p241
      %p243 = pneg %p242
      // Predicated region
      $region45: #{tpu_custom_call.1} parent=5 // pred_check
        _
      $region46: #{tpu_custom_call.1} parent=5 // pred_check_branch
        %245 = sbr.rel (%p242) target = $region48
      $region47: #{tpu_custom_call.1} parent=5 // pred_region
        %s246 = ssub.s32 %s17, 1
        %p247 = scmp.lt.s32.totalorder %s22, 1
        %s248 = scalar_select %p247, %s22, 1
        %s249 = smul.addr %s248, 8
        %s250 = smul.addr %s249, 8
        %s251 = scalar_lea.vmem %s0, %s250
        %p252 = pneg %p43
        %p253 = pneg %p40
        %p254 = pneg %p64
        %p255 = pneg %p61
        %p256 = pneg %p85
        %p257 = pneg %p82
        %p258 = pneg %p106
        %p259 = pneg %p103
        %p260 = pneg %p127
        %p261 = pneg %p124
        %p262 = pneg %p148
        %p263 = pneg %p145
        %p264 = pneg %p169
        %p265 = pneg %p166
        %p266 = pneg %p195
        %p267 = pneg %p192
        %s268 = sand.u32 %s182, 1
        %s269 = scalar_lea.sflag [#allocation4], %s268
        %s270 = sand.u32 %s182, 1
        %s271 = smul.addr %s270, 64
        %s272 = scalar_lea.vmem [#allocation3], %s271
        %p273 = scmp.lt.s32.totalorder %s22, 1
        %s274 = scalar_select %p273, %s22, 1
        %s275 = smul.addr %s274, 8
        %s276 = smul.addr %s275, 8
        %s277 = scalar_lea.vmem %s0, %s276
        %v278 = vld [vmem:[%s277] sm:$0xff]
        %v279 = vld [vmem:[%s277 + $0x8] sm:$0xff]
        %v280 = vld [vmem:[%s277 + $0x10] sm:$0xff]
        %v281 = vld [vmem:[%s277 + $0x18] sm:$0xff]
        %v282 = vld [vmem:[%s277 + $0x20] sm:$0xff]
        %v283 = vld [vmem:[%s277 + $0x28] sm:$0xff]
        %v284 = vld [vmem:[%s277 + $0x30] sm:$0xff]
        %v285 = vld [vmem:[%s277 + $0x38] sm:$0xff]
        %v286 = vadd.f32 %v278, %v279
        %287 = vadd.xlane.f32.xlu0 %v286
        %v288 = vpop.xlane.xlu0 %287
        %v289 = vadd.f32 %v280, %v281
        %290 = vadd.xlane.f32.xlu0 %v289
        %v291 = vpop.xlane.xlu0 %290
        %v292 = vadd.f32 %v282, %v283
        %293 = vadd.xlane.f32.xlu0 %v292
        %v294 = vpop.xlane.xlu0 %293
        %v295 = vadd.f32 %v284, %v285
        %296 = vadd.xlane.f32.xlu0 %v295
        %v297 = vpop.xlane.xlu0 %296
        %v298 = vmul.f32 %v288, 0.00390625
        %v299 = vmul.f32 %v291, 0.00390625
        %v300 = vmul.f32 %v294, 0.00390625
        %v301 = vmul.f32 %v297, 0.00390625
        %v302 = vmax.f32 %v278, %v279
        %303 = vmax.xlane.f32.xlu0 %v302
        %v304 = vpop.xlane.xlu0 %303
        %v305 = vmax.f32 %v280, %v281
        %306 = vmax.xlane.f32.xlu0 %v305
        %v307 = vpop.xlane.xlu0 %306
        %v308 = vmax.f32 %v282, %v283
        %309 = vmax.xlane.f32.xlu0 %v308
        %v310 = vpop.xlane.xlu0 %309
        %v311 = vmax.f32 %v284, %v285
        %312 = vmax.xlane.f32.xlu0 %v311
        %v313 = vpop.xlane.xlu0 %312
        %v314 = vld [vmem:[%s1] sm:$0xff]
        %v315 = vld [vmem:[%s1 + $0x8] sm:$0xff]
        %v316 = vld [vmem:[%s1 + $0x10] sm:$0xff]
        %v317 = vld [vmem:[%s1 + $0x18] sm:$0xff]
        %v318 = vld [vmem:[%s2] sm:$0xff]
        %v319 = vld [vmem:[%s2 + $0x8] sm:$0xff]
        %v320 = vld [vmem:[%s2 + $0x10] sm:$0xff]
        %v321 = vld [vmem:[%s2 + $0x18] sm:$0xff]
        %v322 = vld [vmem:[%s3] sm:$0x1]
        %v323 = vld [vmem:[%s4] sm:$0xff]
        %v324 = vld [vmem:[%s4 + $0x8] sm:$0xff]
        %v325 = vld [vmem:[%s4 + $0x10] sm:$0xff]
        %v326 = vld [vmem:[%s4 + $0x18] sm:$0xff]
        %v327 = vld [vmem:[%s5] sm:$0xff]
        %v328 = vld [vmem:[%s5 + $0x8] sm:$0xff]
        %v329 = vld [vmem:[%s5 + $0x10] sm:$0xff]
        %v330 = vld [vmem:[%s5 + $0x18] sm:$0xff]
        %s331 = sld [smem:[#allocation2]]
        %v332 = vmul.f32 %v314, %v298
        %v333 = vmul.f32 %v315, %v299
        %v334 = vmul.f32 %v316, %v300
        %v335 = vmul.f32 %v317, %v301
        %v336 = vmul.f32 %v318, %v304
        %v337 = vmul.f32 %v319, %v307
        %v338 = vmul.f32 %v320, %v310
        %v339 = vmul.f32 %v321, %v313
        %v340 = vadd.f32 %v332, %v336
        %v341 = vadd.f32 %v333, %v337
        %v342 = vadd.f32 %v334, %v338
        %v343 = vadd.f32 %v335, %v339
        %vm344 = vcmask 31744
        %v345 = vsel %vm344, %v340, 0.0
        %v346 = vsel %vm344, %v341, 0.0
        %v347 = vadd.f32 %v345, %v346
        %v348 = vsel %vm344, %v342, 0.0
        %v349 = vadd.f32 %v347, %v348
        %v350 = vsel %vm344, %v343, 0.0
        %v351 = vadd.f32 %v349, %v350
        %v352 = vrot.slane %v351, 4
        %v353 = vadd.f32 %v351, %v352
        %v354 = vrot.slane %v353, 2
        %v355 = vadd.f32 %v353, %v354
        %v356 = vrot.slane %v355, 1
        %v357 = vadd.f32 %v355, %v356
        %v358 = vadd.f32 %v357, %v322
        %vm359 = vcmp.ge.f32.partialorder %v358, 0.0
        %v360 = vstv %s331
        %v361 = vmul.f32 %v360, %v358
        %v362 = vsel %vm359, %v358, %v361
        %v363 = vlaneseq
        %v364 = vshrl.u32 %v363, 7
        %v365 = vsub.s32 0, %v364
        %v366 = vrot.slane %v362, %v365
        %v367 = vmul.f32 %v323, %v366
        %v368 = vmul.f32 %v324, %v366
        %v369 = vmul.f32 %v325, %v366
        %v370 = vmul.f32 %v326, %v366
        %v371 = vsel %vm344, %v367, 0.0
        %372 = vadd.xlane.f32.xlu0 %v371
        %v373 = vpop.xlane.xlu0 %372
        %v374 = vsel %vm344, %v368, 0.0
        %375 = vadd.xlane.f32.xlu0 %v374
        %v376 = vpop.xlane.xlu0 %375
        %v377 = vsel %vm344, %v369, 0.0
        %378 = vadd.xlane.f32.xlu0 %v377
        %v379 = vpop.xlane.xlu0 %378
        %v380 = vsel %vm344, %v370, 0.0
        %381 = vadd.xlane.f32.xlu0 %v380
        %v382 = vpop.xlane.xlu0 %381
        %v383 = vadd.f32 %v373, %v327
        %v384 = vadd.f32 %v376, %v328
        %v385 = vadd.f32 %v379, %v329
        %v386 = vadd.f32 %v382, %v330
        %v387 = vxor.u32 %v383, 2147483648
        %v388 = vxor.u32 %v384, 2147483648
        %v389 = vxor.u32 %v385, 2147483648
        %v390 = vxor.u32 %v386, 2147483648
        %v391 = vmul.f32 %v387, 1.442695
        %v392 = vpow.pop %v391
        %v393 = vmul.f32 %v388, 1.442695
        %v394 = vpow.pop %v393
        %v395 = vmul.f32 %v389, 1.442695
        %v396 = vpow.pop %v395
        %v397 = vmul.f32 %v390, 1.442695
        %v398 = vpow.pop %v397
        %v399 = vadd.f32 %v392, 1.0
        %v400 = vadd.f32 %v394, 1.0
        %v401 = vadd.f32 %v396, 1.0
        %v402 = vadd.f32 %v398, 1.0
        %v403 = vrcp.pop %v399
        %v404 = vmul.f32 1.0, %v403
        %v405 = vrcp.pop %v400
        %v406 = vmul.f32 1.0, %v405
        %v407 = vrcp.pop %v401
        %v408 = vmul.f32 1.0, %v407
        %v409 = vrcp.pop %v402
        %v410 = vmul.f32 1.0, %v409
        %412 = vset.pattern.permute.xlu0 0
        %413 = vperm.xlu0 %412, %v404
        %v414 = vpop.permute.xlu0 %413
        %417 = vset.pattern.permute.xlu0 0
        %418 = vperm.xlu0 %417, %v406
        %v419 = vpop.permute.xlu0 %418
        %422 = vset.pattern.permute.xlu0 0
        %423 = vperm.xlu0 %422, %v408
        %v424 = vpop.permute.xlu0 %423
        %427 = vset.pattern.permute.xlu0 0
        %428 = vperm.xlu0 %427, %v410
        %v429 = vpop.permute.xlu0 %428
        %v431 = vmul.f32 %v278, %v414
        %v432 = vmul.f32 %v279, %v414
        %v433 = vmul.f32 %v280, %v419
        %v434 = vmul.f32 %v281, %v419
        %v435 = vmul.f32 %v282, %v424
        %v436 = vmul.f32 %v283, %v424
        %v437 = vmul.f32 %v284, %v429
        %v438 = vmul.f32 %v285, %v429
        %439 = vst [vmem:[%s272] sm:$0xff] %v431
        %440 = vst [vmem:[%s272 + $0x8] sm:$0xff] %v432
        %441 = vst [vmem:[%s272 + $0x10] sm:$0xff] %v433
        %442 = vst [vmem:[%s272 + $0x18] sm:$0xff] %v434
        %443 = vst [vmem:[%s272 + $0x20] sm:$0xff] %v435
        %444 = vst [vmem:[%s272 + $0x28] sm:$0xff] %v436
        %445 = vst [vmem:[%s272 + $0x30] sm:$0xff] %v437
        %446 = vst [vmem:[%s272 + $0x38] sm:$0xff] %v438
        %s447 = sand.u32 %s182, 1
        %s448 = scalar_lea.sflag [#allocation4], %s447
        %s449 = sand.u32 %s182, 1
        %s450 = smul.addr %s449, 64
        %s451 = scalar_lea.vmem [#allocation3], %s450
        // Predicated region
        $region49: #{tpu_custom_call.1} parent=47 // pred_check
          %p452 = pneg %p192
        $region50: #{tpu_custom_call.1} parent=47 // pred_check_branch
          %454 = sbr.rel (%p452) target = $region52
        $region51: #{tpu_custom_call.1} parent=47 // pred_region
          %s456 = ssub.s32 1024, 1024
          %457 = vsyncadd %s448, %s456
          %s458 = smul.addr %s22, 8
          %s459 = smul.addr %s458, 128
          %s460 = scalar_lea.hbm %s7, %s459
          %s461 = sshll.u32 %s451, 4
          %s462 = int_to_ptr.vmem [resolvable:$true] %s461
          %467 = dma.vmem_to_hbm [thread:$0]  %s462, 1024, %s460, %s448, 256, 256, 16
        $region52: #{tpu_custom_call.1} parent=47 // pred_fallthru
          _
      $region48: #{tpu_custom_call.1} parent=5 // pred_fallthru
        _
      %p468 = scmp.le.s32.totalorder 2, %s17
      // Predicated region
      $region53: #{tpu_custom_call.1} parent=5 // pred_check
        %p469 = pneg %p468
      $region54: #{tpu_custom_call.1} parent=5 // pred_check_branch
        %471 = sbr.rel (%p469) target = $region56
      $region55: #{tpu_custom_call.1} parent=5 // pred_region
        %s472 = ssub.s32 %s17, 2
        // Predicated region
        $region57: #{tpu_custom_call.1} parent=55 // pred_check
          %p473 = pneg %p198
        $region58: #{tpu_custom_call.1} parent=55 // pred_check_branch
          %475 = sbr.rel (%p473) target = $region60
        $region59: #{tpu_custom_call.1} parent=55 // pred_region
          %s476 = sand.u32 %s183, 1
          %s477 = scalar_lea.sflag [#allocation4], %s476
          %s478 = sand.u32 %s183, 1
          %s479 = smul.addr %s478, 64
          %s480 = scalar_lea.vmem [#allocation3], %s479
          %481 = dma.done %s477, 1024
        $region60: #{tpu_custom_call.1} parent=55 // pred_fallthru
          _
      $region56: #{tpu_custom_call.1} parent=5 // pred_fallthru
        _
    $region6: #{tpu_custom_call.1} parent=1 // loop_footer
      %s21 = sadd.s32 1, %s17
    $region7: #{tpu_custom_call.1} parent=1 // loop_footer_branch
      %16 = sbr.rel target = $region3
    $region8: #{tpu_custom_call.1} parent=1 // loop_exit
      _
    %482 = vsyncpa [#allocation4], 1
    %s483 = scalar_lea.sflag [#allocation4], 1
    %484 = vsyncpa %s483, 1

</llo_original>
